<compile_context>
chip_gen: v5e
topology: v5e:2x2
jax: 0.10.0
libtpu: 0.0.40
codegen_flags: <defaults>
</compile_context>

<pallas_src>
import jax
import jax.numpy as jnp
from jax.experimental import pallas as pl
from jax.experimental.pallas import tpu as pltpu


def _conv1x1_2d_kernel(w_ref, x_ref, o_ref):
    # w_ref: (co_blk, Cin) bf16 -- this grid step's slice of the weight
    # x_ref: (Cin, HW)     bf16 -- whole (batch=1) activation, constant across steps
    # o_ref: (co_blk, HW)  f32  -- this grid step's slice of the output
    o_ref[...] = jnp.dot(
        w_ref[...], x_ref[...], preferred_element_type=jnp.float32
    ).astype(o_ref.dtype)


def _conv1x1_batched_kernel(w_ref, x_ref, o_ref):
    # General N>1 path (dead code for this module, kept for reuse):
    # w_ref: (co_blk, Cin), x_ref: (N, Cin, HW), o_ref: (N, co_blk, HW)
    o_ref[...] = jnp.einsum(
        "oc,nch->noh", w_ref[...], x_ref[...], preferred_element_type=jnp.float32
    ).astype(o_ref.dtype)


def conv2d_1x1(x_nchw, weight_oihw, *, compute_dtype=jnp.bfloat16):
    """1x1 conv, stride 1, no bias.  x: (N, Cin, H, W), weight: (Cout, Cin, 1, 1)."""
    N, Cin, H, W = x_nchw.shape
    Cout = weight_oihw.shape[0]
    HW = H * W

    # Free contiguous view + downcast (halves DMA bytes into the kernel).
    w2d = weight_oihw.reshape(Cout, Cin).astype(compute_dtype)

    # Split Cout across a 2-wide "parallel" axis so both v7x TensorCores participate.
    # 208 -> 2 x 104 (still a multiple of 8, so the sublane rule is satisfied).
    n_split = 2 if (Cout % 16 == 0) else 1
    co_blk = Cout // n_split

    in_itemsize = jnp.dtype(compute_dtype).itemsize
    out_itemsize = jnp.dtype(x_nchw.dtype).itemsize
    cost = pl.CostEstimate(
        flops=2 * N * Cout * Cin * HW,
        transcendentals=0,
        bytes_accessed=(N * Cin * HW + Cout * Cin) * in_itemsize
        + N * Cout * HW * out_itemsize,
    )
    cparams = pltpu.CompilerParams(dimension_semantics=("parallel",))

    if N == 1:
        # Batch dim removed by a free contiguous reshape -- pure 2-D matmul kernel.
        x2d = x_nchw.reshape(Cin, HW).astype(compute_dtype)
        out2d = pl.pallas_call(
            _conv1x1_2d_kernel,
            out_shape=jax.ShapeDtypeStruct((Cout, HW), x_nchw.dtype),
            grid=(n_split,),
            in_specs=[
                pl.BlockSpec((co_blk, Cin), lambda c: (c, 0)),   # weight slice per step
                pl.BlockSpec((Cin, HW), lambda c: (0, 0)),       # whole activation, constant
            ],
            out_specs=pl.BlockSpec((co_blk, HW), lambda c: (c, 0)),
            compiler_params=cparams,
            cost_estimate=cost,
        )(w2d, x2d)
        return out2d.reshape(1, Cout, H, W)

    # N > 1: fold the whole batch into a single grid step (no per-batch tiny matmuls).
    x3d = x_nchw.reshape(N, Cin, HW).astype(compute_dtype)
    out3d = pl.pallas_call(
        _conv1x1_batched_kernel,
        out_shape=jax.ShapeDtypeStruct((N, Cout, HW), x_nchw.dtype),
        grid=(n_split,),
        in_specs=[
            pl.BlockSpec((co_blk, Cin), lambda c: (c, 0)),
            pl.BlockSpec((N, Cin, HW), lambda c: (0, 0, 0)),
        ],
        out_specs=pl.BlockSpec((N, co_blk, HW), lambda c: (0, c, 0)),
        compiler_params=cparams,
        cost_estimate=cost,
    )(w2d, x3d)
    return out3d.reshape(N, Cout, H, W)


if __name__ == "__main__":
    key = jax.random.PRNGKey(0)
    kx, kw = jax.random.split(key)

    # Shapes implied by the module's forward pass (already small).
    x = jax.random.normal(kx, (1, 208, 14, 14), dtype=jnp.float32)
    # Conv2d(208, 208, kernel_size=(1,1), bias=False) weight: (208, 208, 1, 1)
    weight = jax.random.normal(kw, (208, 208, 1, 1), dtype=jnp.float32) * 0.05

    y = conv2d_1x1(x, weight)
    jax.block_until_ready(y)
    assert y.shape == (1, 208, 14, 14)
    assert y.dtype == x.dtype

    w2d = weight.reshape(208, 208)

    # Reference 1 (tight): exact math for what the kernel computes -- bf16-rounded inputs,
    # f32 accumulation.
    xb = x.astype(jnp.bfloat16).astype(jnp.float32)
    wb = w2d.astype(jnp.bfloat16).astype(jnp.float32)
    ref_bf16 = jnp.einsum("oc,nchw->nohw", wb, xb)
    assert jnp.allclose(y, ref_bf16, atol=1e-3, rtol=1e-3)

    # Reference 2 (loose): full-f32 Conv2d semantics; tolerance sized for the bf16 input
    # rounding recommended by the perf review.
    ref_f32 = jnp.einsum("oc,nchw->nohw", w2d, x)
    assert jnp.allclose(y, ref_f32, atol=5e-2, rtol=5e-2)

    print("KERNEL_OK")
</pallas_src>

<mosaic_0001>
module attributes {stable_mosaic.version = 11 : i64} {
  func.func @_conv1x1_2d_kernel(%arg0: i32, %arg1: memref<104x208xbf16, #tpu.memory_space<vmem>>, %arg2: memref<208x196xbf16, #tpu.memory_space<vmem>>, %arg3: memref<104x196xf32, #tpu.memory_space<vmem>>) attributes {dimension_semantics = [#tpu.dimension_semantics<parallel>], iteration_bounds = array<i64: 2>, scalar_prefetch = 0 : i64, scratch_operands = 0 : i64, tpu.core_type = #tpu.core_type<tc>, window_params = [{transform_indices = @transform_0, window_bounds = array<i64: 104, 208>}, {pipeline_mode = #tpu.pipeline_mode<synchronous>, transform_indices = @transform_1, window_bounds = array<i64: 208, 196>}, {transform_indices = @transform_2, window_bounds = array<i64: 104, 196>}]} {
    %c0 = arith.constant 0 : index
    %c0_0 = arith.constant 0 : index
    %0 = vector.load %arg1[%c0, %c0_0] : memref<104x208xbf16, #tpu.memory_space<vmem>>, vector<104x208xbf16>
    %c0_1 = arith.constant 0 : index
    %c0_2 = arith.constant 0 : index
    %1 = vector.load %arg2[%c0_1, %c0_2] : memref<208x196xbf16, #tpu.memory_space<vmem>>, vector<208x196xbf16>
    %cst = arith.constant dense<0.000000e+00> : vector<104x196xf32>
    %2 = tpu.matmul %0, %1, %cst {dimension_numbers = #tpu.dot_dimension_numbers<[1], [0], [0], [1], [0, 0, 1, 1], [], []>} : vector<104x208xbf16>, vector<208x196xbf16>, vector<104x196xf32> -> vector<104x196xf32>
    %c0_3 = arith.constant 0 : index
    %c0_4 = arith.constant 0 : index
    %3 = vector.load %arg3[%c0_3, %c0_4] : memref<104x196xf32, #tpu.memory_space<vmem>>, vector<104x196xf32>
    tpu.vector_store %arg3[%c0_3, %c0_4], %2 {strides = array<i32>} : memref<104x196xf32, #tpu.memory_space<vmem>>, vector<104x196xf32>,
    return
  }
  func.func @transform_0(%arg0: i32) -> (i32, i32) {
    %c0_i32 = arith.constant 0 : i32
    %c0_i32_0 = arith.constant 0 : i32
    return %arg0, %c0_i32 : i32, i32
  }
  func.func @transform_1(%arg0: i32) -> (i32, i32) {
    %c0_i32 = arith.constant 0 : i32
    %c0_i32_0 = arith.constant 0 : i32
    %c0_i32_1 = arith.constant 0 : i32
    return %c0_i32, %c0_i32_0 : i32, i32
  }
  func.func @transform_2(%arg0: i32) -> (i32, i32) {
    %c0_i32 = arith.constant 0 : i32
    %c0_i32_0 = arith.constant 0 : i32
    return %arg0, %c0_i32 : i32, i32
  }
}

</mosaic_0001>

<llo_original>
// kernel: tpu_custom_call.1
$region0: #{tpu_custom_call.1}
  #allocation0 [shape = 'u32[]', space=smem, size = 0x4, offset = 0x4, fixed_abs, tag = 'smem constant byte address 0x4 - core index']
  #allocation1 [shape = 'u32[72,128]{1,0:T(1,128)}', space=vmem, size = 0x9000, scoped, tag = 'internal scratch']
  %s0 = inlined_call_operand.vmem [shape: bf16[208,208], index: 0, kind: input, shape index: {}]
  %s1 = inlined_call_operand.vmem [shape: bf16[208,196], index: 1, kind: input, shape index: {}]
  %s2 = inlined_call_operand.vmem [shape: f32[208,196], index: 2, kind: output, shape index: {}]
  %s3 = sld [smem:[#allocation0]]
  $region41: #{tpu_custom_call.1} parent=0
    _
  %s5 = ssub.s32 1, %s3
  %s6 = scalar_select 0, %s5, %s3
  loop: start=0, step=1, limit=4
  $region2: #{tpu_custom_call.1} parent=0 // loop_pre_header
    _
  $region3: #{tpu_custom_call.1} parent=0 // loop_header
    %s8 = sphi 0, %s12
    %p9 = scmp.ge.s32.totalorder %s8, 4
    %s18 = sphi 0, %s20
    %s21 = sphi 0, %s18
    %s22 = sphi 0, %s21
    %s38 = sphi 0, %s22
    %s42 = sphi 0, %s42
    %s44 = sphi 0, %s42
    %s45 = sphi 0, %s44
    %s59 = sphi 0, %s45
    %s65 = sphi 0, %s67
    %s68 = sphi 0, %s65
    %s69 = sphi 0, %s68
    %s85 = sphi 0, %s69
  $region4: #{tpu_custom_call.1} parent=0 // loop_header_branch
    %11 = sbr.rel (%p9) target = $region8
  $region5: #{tpu_custom_call.1} parent=0 // loop_body
    %s13 = ssub.s32 %s8, 1
    %s14 = ssub.s32 %s8, 2
    %s15 = sadd.s32 %s8, 1
    %s16 = ssub.s32 %s8, %s15
    %p17 = scmp.eq.s32.totalorder %s16, 0
    %s19 = sadd.s32 %s18, 1
    %s20 = scalar_select %p17, %s18, %s19
    %p23 = pneg %p17
    %p24 = scmp.eq.s32.totalorder %s8, 1
    %p25 = por %p23, %p24
    %p26 = scmp.ne.s32.totalorder %s18, %s21
    %p27 = scmp.eq.s32.totalorder %s8, 0
    %p28 = por %p26, %p27
    %p29 = scmp.ne.s32.totalorder %s18, %s21
    %p30 = scmp.eq.s32.totalorder %s13, 1
    %p31 = por %p29, %p30
    %p32 = scmp.ne.s32.totalorder %s21, %s22
    %p33 = scmp.eq.s32.totalorder %s13, 0
    %p34 = por %p32, %p33
    %p35 = scmp.ne.s32.totalorder %s21, %s22
    %p36 = scmp.eq.s32.totalorder %s14, 1
    %p37 = por %p35, %p36
    %p39 = scmp.ne.s32.totalorder %s22, %s38
    %p40 = scmp.eq.s32.totalorder %s14, 0
    %p41 = por %p39, %p40
    %s43 = sadd.s32 %s42, 1
    %p46 = scmp.eq.s32.totalorder %s8, 1
    %p47 = scmp.ne.s32.totalorder %s42, %s44
    %p48 = scmp.eq.s32.totalorder %s8, 0
    %p49 = por %p47, %p48
    %p50 = scmp.ne.s32.totalorder %s42, %s44
    %p51 = scmp.eq.s32.totalorder %s13, 1
    %p52 = por %p50, %p51
    %p53 = scmp.ne.s32.totalorder %s44, %s45
    %p54 = scmp.eq.s32.totalorder %s13, 0
    %p55 = por %p53, %p54
    %p56 = scmp.ne.s32.totalorder %s44, %s45
    %p57 = scmp.eq.s32.totalorder %s14, 1
    %p58 = por %p56, %p57
    %p60 = scmp.ne.s32.totalorder %s45, %s59
    %p61 = scmp.eq.s32.totalorder %s14, 0
    %p62 = por %p60, %p61
    %s63 = ssub.s32 %s8, %s15
    %p64 = scmp.eq.s32.totalorder %s63, 0
    %s66 = sadd.s32 %s65, 1
    %s67 = scalar_select %p64, %s65, %s66
    %p70 = pneg %p64
    %p71 = scmp.eq.s32.totalorder %s8, 1
    %p72 = por %p70, %p71
    %p73 = scmp.ne.s32.totalorder %s65, %s68
    %p74 = scmp.eq.s32.totalorder %s8, 0
    %p75 = por %p73, %p74
    %p76 = scmp.ne.s32.totalorder %s65, %s68
    %p77 = scmp.eq.s32.totalorder %s13, 1
    %p78 = por %p76, %p77
    %p79 = scmp.ne.s32.totalorder %s68, %s69
    %p80 = scmp.eq.s32.totalorder %s13, 0
    %p81 = por %p79, %p80
    %p82 = scmp.ne.s32.totalorder %s68, %s69
    %p83 = scmp.eq.s32.totalorder %s14, 1
    %p84 = por %p82, %p83
    %p86 = scmp.ne.s32.totalorder %s69, %s85
    %p87 = scmp.eq.s32.totalorder %s14, 0
    %p88 = por %p86, %p87
    %p89 = scmp.le.s32.totalorder 1, %s8
    %p90 = scmp.lt.s32.totalorder %s8, 3
    %p91 = pnand %p89, %p90
    %p92 = pneg %p91
    // Predicated region
    $region9: #{tpu_custom_call.1} parent=5 // pred_check
      _
    $region10: #{tpu_custom_call.1} parent=5 // pred_check_branch
      %94 = sbr.rel (%p91) target = $region12
    $region11: #{tpu_custom_call.1} parent=5 // pred_region
      %s95 = ssub.s32 %s8, 1
      // Predicated region
      $region13: #{tpu_custom_call.1} parent=11 // pred_check
        %p96 = pneg %p55
      $region14: #{tpu_custom_call.1} parent=11 // pred_check_branch
        %98 = sbr.rel (%p96) target = $region16
      $region15: #{tpu_custom_call.1} parent=11 // pred_region
        _
      $region16: #{tpu_custom_call.1} parent=11 // pred_fallthru
        _
    $region12: #{tpu_custom_call.1} parent=5 // pred_fallthru
      _
    %p99 = scmp.lt.s32.totalorder %s8, 2
    // Predicated region
    $region17: #{tpu_custom_call.1} parent=5 // pred_check
      %p100 = pneg %p99
    $region18: #{tpu_custom_call.1} parent=5 // pred_check_branch
      %102 = sbr.rel (%p100) target = $region20
    $region19: #{tpu_custom_call.1} parent=5 // pred_region
      // Predicated region
      $region21: #{tpu_custom_call.1} parent=19 // pred_check
        %p103 = pneg %p28
      $region22: #{tpu_custom_call.1} parent=19 // pred_check_branch
        %105 = sbr.rel (%p103) target = $region24
      $region23: #{tpu_custom_call.1} parent=19 // pred_region
        %s106 = smul.u32 13, %s8
        %p107 = scmp.lt.s32.totalorder %s106, 25
        %s108 = scalar_select %p107, %s106, 25
        %s109 = smul.addr %s108, 2
        %s110 = smul.addr %s109, 4
        %s111 = scalar_lea.vmem %s0, %s110
        %s112 = smul.u32 13, %s8
      $region24: #{tpu_custom_call.1} parent=19 // pred_fallthru
        _
    $region20: #{tpu_custom_call.1} parent=5 // pred_fallthru
      _
    %p113 = scmp.le.s32.totalorder 1, %s8
    %p114 = scmp.lt.s32.totalorder %s8, 3
    %p115 = pnand %p113, %p114
    %p116 = pneg %p115
    // Predicated region
    $region25: #{tpu_custom_call.1} parent=5 // pred_check
      _
    $region26: #{tpu_custom_call.1} parent=5 // pred_check_branch
      %118 = sbr.rel (%p115) target = $region28
    $region27: #{tpu_custom_call.1} parent=5 // pred_region
      %s119 = ssub.s32 %s8, 1
      %s120 = smul.u32 13, %s13
      %p121 = scmp.lt.s32.totalorder %s120, 25
      %s122 = scalar_select %p121, %s120, 25
      %s123 = smul.addr %s122, 2
      %s124 = smul.addr %s123, 4
      %s125 = scalar_lea.vmem %s0, %s124
      %p126 = pneg %p34
      %p127 = pneg %p31
      %p128 = pneg %p55
      %p129 = pneg %p52
      %p130 = pneg %p81
      %p131 = pneg %p78
      %s132 = smul.u32 13, %s13
      %p133 = scmp.lt.s32.totalorder %s132, 25
      %s134 = scalar_select %p133, %s132, 25
      %s135 = smul.addr %s134, 2
      %s136 = smul.addr %s135, 8
      %s137 = scalar_lea.vmem %s2, %s136
      %s138 = smul.u32 13, %s13
      %p139 = scmp.lt.s32.totalorder %s138, 25
      %s140 = scalar_select %p139, %s138, 25
      %s141 = smul.addr %s140, 2
      %s142 = smul.addr %s141, 4
      %s143 = scalar_lea.vmem %s0, %s142
      %s144 = smul.u32 13, %s13
      %s145 = smul.u32 13, %s13
      %p146 = scmp.lt.s32.totalorder %s145, 25
      %s147 = scalar_select %p146, %s145, 25
      %s148 = smul.addr %s147, 2
      %s149 = smul.addr %s148, 8
      %s150 = scalar_lea.vmem %s2, %s149
      %s151 = smul.u32 13, %s13
      %v153 = vld [vmem:[%s143] sm:$0xff]
      %v154 = vld [vmem:[%s143 + $0x8] sm:$0xff]
      %v155 = vld [vmem:[%s143 + $0x10] sm:$0xff]
      %v156 = vld [vmem:[%s143 + $0x18] sm:$0xff]
      %v157 = vld [vmem:[%s143 + $0x20] sm:$0xff]
      %v158 = vld [vmem:[%s143 + $0x28] sm:$0xff]
      %v159 = vld [vmem:[%s143 + $0x30] sm:$0xff]
      %v160 = vld [vmem:[%s143 + $0x38] sm:$0xff]
      %v161 = vld [vmem:[%s143 + $0x40] sm:$0xff]
      %v162 = vld [vmem:[%s143 + $0x48] sm:$0xff]
      %v163 = vld [vmem:[%s143 + $0x50] sm:$0xff]
      %v164 = vld [vmem:[%s143 + $0x58] sm:$0xff]
      %v165 = vld [vmem:[%s143 + $0x60] sm:$0xff]
      %v166 = vld [vmem:[%s1] sm:$0xff]
      %v167 = vld [vmem:[%s1 + $0x8] sm:$0xff]
      %v168 = vld [vmem:[%s1 + $0x10] sm:$0xff]
      %v169 = vld [vmem:[%s1 + $0x18] sm:$0xff]
      %v170 = vld [vmem:[%s1 + $0x20] sm:$0xff]
      %v171 = vld [vmem:[%s1 + $0x28] sm:$0xff]
      %v172 = vld [vmem:[%s1 + $0x30] sm:$0xff]
      %v173 = vld [vmem:[%s1 + $0x38] sm:$0xff]
      %v174 = vld [vmem:[%s1 + $0x40] sm:$0xff]
      %v175 = vld [vmem:[%s1 + $0x48] sm:$0xff]
      %v176 = vld [vmem:[%s1 + $0x50] sm:$0xff]
      %v177 = vld [vmem:[%s1 + $0x58] sm:$0xff]
      %v178 = vld [vmem:[%s1 + $0x60] sm:$0xff]
      %v179 = vld [vmem:[%s1 + $0x68] sm:$0xff]
      %v180 = vld [vmem:[%s1 + $0x70] sm:$0xff]
      %v181 = vld [vmem:[%s1 + $0x78] sm:$0xff]
      %v182 = vld [vmem:[%s1 + $0x80] sm:$0xff]
      %v183 = vld [vmem:[%s1 + $0x88] sm:$0xff]
      %v184 = vld [vmem:[%s1 + $0x90] sm:$0xff]
      %v185 = vld [vmem:[%s1 + $0x98] sm:$0xff]
      %v186 = vld [vmem:[%s1 + $0xa0] sm:$0xff]
      %v187 = vld [vmem:[%s1 + $0xa8] sm:$0xff]
      %v188 = vld [vmem:[%s1 + $0xb0] sm:$0xff]
      %v189 = vld [vmem:[%s1 + $0xb8] sm:$0xff]
      %v190 = vld [vmem:[%s1 + $0xc0] sm:$0xff]
      %v191 = vld [vmem:[%s1 + $0xc8] sm:$0xff]
      %v205 = vunpack.c.l.b16 %v153
      %v206 = vunpack.c.h.b16 %v153
      %v207 = vunpack.c.l.b16 %v154
      %v208 = vunpack.c.h.b16 %v154
      %v209 = vunpack.c.l.b16 %v155
      %v210 = vunpack.c.h.b16 %v155
      %v211 = vunpack.c.l.b16 %v156
      %v212 = vunpack.c.h.b16 %v156
      %v213 = vunpack.c.l.b16 %v157
      %v214 = vunpack.c.h.b16 %v157
      %v215 = vunpack.c.l.b16 %v158
      %v216 = vunpack.c.h.b16 %v158
      %v217 = vunpack.c.l.b16 %v159
      %v218 = vunpack.c.h.b16 %v159
      %v219 = vunpack.c.l.b16 %v160
      %v220 = vunpack.c.h.b16 %v160
      %v221 = vunpack.c.l.b16 %v161
      %v222 = vunpack.c.h.b16 %v161
      %v223 = vunpack.c.l.b16 %v162
      %v224 = vunpack.c.h.b16 %v162
      %v225 = vunpack.c.l.b16 %v163
      %v226 = vunpack.c.h.b16 %v163
      %v227 = vunpack.c.l.b16 %v164
      %v228 = vunpack.c.h.b16 %v164
      %v229 = vunpack.c.l.b16 %v165
      %v230 = vunpack.c.h.b16 %v165
      %v231 = vpack.c.b16 %v207, %v205
      %v232 = vpack.c.b16 %v208, %v206
      %v233 = vpack.c.b16 %v211, %v209
      %v234 = vpack.c.b16 %v212, %v210
      %v235 = vpack.c.b16 %v215, %v213
      %v236 = vpack.c.b16 %v216, %v214
      %v237 = vpack.c.b16 %v219, %v217
      %v238 = vpack.c.b16 %v220, %v218
      %v239 = vpack.c.b16 %v223, %v221
      %v240 = vpack.c.b16 %v224, %v222
      %v241 = vpack.c.b16 %v227, %v225
      %v242 = vpack.c.b16 %v228, %v226
      %v243 = vpack.c.b16 %v229, %v229
      %v244 = vpack.c.b16 %v230, %v230
      %v278 = vunpack.c.l.b16 %v166
      %v279 = vunpack.c.h.b16 %v166
      %v280 = vunpack.c.l.b16 %v167
      %v281 = vunpack.c.h.b16 %v167
      %v282 = vunpack.c.l.b16 %v168
      %v283 = vunpack.c.h.b16 %v168
      %v284 = vunpack.c.l.b16 %v169
      %v285 = vunpack.c.h.b16 %v169
      %v286 = vunpack.c.l.b16 %v170
      %v287 = vunpack.c.h.b16 %v170
      %v288 = vunpack.c.l.b16 %v171
      %v289 = vunpack.c.h.b16 %v171
      %v290 = vunpack.c.l.b16 %v172
      %v291 = vunpack.c.h.b16 %v172
      %v292 = vunpack.c.l.b16 %v173
      %v293 = vunpack.c.h.b16 %v173
      %v294 = vunpack.c.l.b16 %v174
      %v295 = vunpack.c.h.b16 %v174
      %v296 = vunpack.c.l.b16 %v175
      %v297 = vunpack.c.h.b16 %v175
      %v298 = vunpack.c.l.b16 %v176
      %v299 = vunpack.c.h.b16 %v176
      %v300 = vunpack.c.l.b16 %v177
      %v301 = vunpack.c.h.b16 %v177
      %v302 = vunpack.c.l.b16 %v178
      %v303 = vunpack.c.h.b16 %v178
      %v304 = vunpack.c.l.b16 %v179
      %v305 = vunpack.c.h.b16 %v179
      %v306 = vunpack.c.l.b16 %v180
      %v307 = vunpack.c.h.b16 %v180
      %v308 = vunpack.c.l.b16 %v181
      %v309 = vunpack.c.h.b16 %v181
      %v310 = vunpack.c.l.b16 %v182
      %v311 = vunpack.c.h.b16 %v182
      %v312 = vunpack.c.l.b16 %v183
      %v313 = vunpack.c.h.b16 %v183
      %v314 = vunpack.c.l.b16 %v184
      %v315 = vunpack.c.h.b16 %v184
      %v316 = vunpack.c.l.b16 %v185
      %v317 = vunpack.c.h.b16 %v185
      %v318 = vunpack.c.l.b16 %v186
      %v319 = vunpack.c.h.b16 %v186
      %v320 = vunpack.c.l.b16 %v187
      %v321 = vunpack.c.h.b16 %v187
      %v322 = vunpack.c.l.b16 %v188
      %v323 = vunpack.c.h.b16 %v188
      %v324 = vunpack.c.l.b16 %v189
      %v325 = vunpack.c.h.b16 %v189
      %v326 = vunpack.c.l.b16 %v190
      %v327 = vunpack.c.h.b16 %v190
      %v328 = vunpack.c.l.b16 %v191
      %v329 = vunpack.c.h.b16 %v191
      %v330 = vpack.c.b16 %v280, %v278
      %v331 = vpack.c.b16 %v281, %v279
      %v332 = vpack.c.b16 %v284, %v282
      %v333 = vpack.c.b16 %v285, %v283
      %v334 = vpack.c.b16 %v288, %v286
      %v335 = vpack.c.b16 %v289, %v287
      %v336 = vpack.c.b16 %v292, %v290
      %v337 = vpack.c.b16 %v293, %v291
      %v338 = vpack.c.b16 %v296, %v294
      %v339 = vpack.c.b16 %v297, %v295
      %v340 = vpack.c.b16 %v300, %v298
      %v341 = vpack.c.b16 %v301, %v299
      %v342 = vpack.c.b16 %v304, %v302
      %v343 = vpack.c.b16 %v305, %v303
      %v344 = vpack.c.b16 %v308, %v306
      %v345 = vpack.c.b16 %v309, %v307
      %v346 = vpack.c.b16 %v312, %v310
      %v347 = vpack.c.b16 %v313, %v311
      %v348 = vpack.c.b16 %v316, %v314
      %v349 = vpack.c.b16 %v317, %v315
      %v350 = vpack.c.b16 %v320, %v318
      %v351 = vpack.c.b16 %v321, %v319
      %v352 = vpack.c.b16 %v324, %v322
      %v353 = vpack.c.b16 %v325, %v323
      %v354 = vpack.c.b16 %v328, %v326
      %v355 = vpack.c.b16 %v329, %v327
      %vm382 = vcmask 654336
      %v384 = vsel %vm382, %v232, 0
      %v387 = vsel %vm382, %v234, 0
      %v390 = vsel %vm382, %v236, 0
      %v393 = vsel %vm382, %v238, 0
      %v396 = vsel %vm382, %v240, 0
      %v399 = vsel %vm382, %v242, 0
      %v402 = vsel %vm382, %v244, 0
      %404 = vmatpush.bf16.msra.mxu0 %v344
      %405 = vmatpush.bf16.msra.mxu0 %v342
      %406 = vmatpush.bf16.msra.mxu0 %v340
      %407 = vmatpush.bf16.msra.mxu0 %v338
      %408 = vmatpush.bf16.msra.mxu0 %v336
      %409 = vmatpush.bf16.msra.mxu0 %v334
      %410 = vmatpush.bf16.msra.mxu0 %v332
      %411 = vmatpush.bf16.msra.mxu0 %v330
      %412 = vmatmul.bf16.gmra.mxu0 %v231
      %v413 = vpop.f32.mrf.mxu0
      %v414 = vadd.f32 0.0, %v413
      %v415 = vpop.f32.mrf.mxu0
      %v416 = vadd.f32 0.0, %v415
      %417 = vmatmul.bf16.gmra.mxu0 %v233
      %v418 = vpop.f32.mrf.mxu0
      %v419 = vadd.f32 0.0, %v418
      %v420 = vpop.f32.mrf.mxu0
      %v421 = vadd.f32 0.0, %v420
      %422 = vmatmul.bf16.gmra.mxu0 %v235
      %v423 = vpop.f32.mrf.mxu0
      %v424 = vadd.f32 0.0, %v423
      %v425 = vpop.f32.mrf.mxu0
      %v426 = vadd.f32 0.0, %v425
      %427 = vmatmul.bf16.gmra.mxu0 %v237
      %v428 = vpop.f32.mrf.mxu0
      %v429 = vadd.f32 0.0, %v428
      %v430 = vpop.f32.mrf.mxu0
      %v431 = vadd.f32 0.0, %v430
      %432 = vmatmul.bf16.gmra.mxu0 %v239
      %v433 = vpop.f32.mrf.mxu0
      %v434 = vadd.f32 0.0, %v433
      %v435 = vpop.f32.mrf.mxu0
      %v436 = vadd.f32 0.0, %v435
      %437 = vmatmul.bf16.gmra.mxu0 %v241
      %v438 = vpop.f32.mrf.mxu0
      %v439 = vadd.f32 0.0, %v438
      %v440 = vpop.f32.mrf.mxu0
      %v441 = vadd.f32 0.0, %v440
      %442 = vmatmul.bf16.gmra.mxu0 %v243
      %v443 = vpop.f32.mrf.mxu0
      %v444 = vadd.f32 0.0, %v443
      %v445 = vpop.f32.mrf.mxu0
      %446 = vdwg.mxu0
      %447 = vmatpush.bf16.msra.mxu0 0
      %448 = vmatpush.bf16.msra.mxu0 0
      %449 = vmatpush.bf16.msra.mxu0 0
      %450 = vmatpush.bf16.msra.mxu0 %v354
      %451 = vmatpush.bf16.msra.mxu0 %v352
      %452 = vmatpush.bf16.msra.mxu0 %v350
      %453 = vmatpush.bf16.msra.mxu0 %v348
      %454 = vmatpush.bf16.msra.mxu0 %v346
      %455 = vmatmul.bf16.gmra.mxu0 %v384
      %v456 = vpop.f32.mrf.mxu0
      %v457 = vadd.f32 %v414, %v456
      %v458 = vpop.f32.mrf.mxu0
      %v459 = vadd.f32 %v416, %v458
      %460 = vmatmul.bf16.gmra.mxu0 %v387
      %v461 = vpop.f32.mrf.mxu0
      %v462 = vadd.f32 %v419, %v461
      %v463 = vpop.f32.mrf.mxu0
      %v464 = vadd.f32 %v421, %v463
      %465 = vmatmul.bf16.gmra.mxu0 %v390
      %v466 = vpop.f32.mrf.mxu0
      %v467 = vadd.f32 %v424, %v466
      %v468 = vpop.f32.mrf.mxu0
      %v469 = vadd.f32 %v426, %v468
      %470 = vmatmul.bf16.gmra.mxu0 %v393
      %v471 = vpop.f32.mrf.mxu0
      %v472 = vadd.f32 %v429, %v471
      %v473 = vpop.f32.mrf.mxu0
      %v474 = vadd.f32 %v431, %v473
      %475 = vmatmul.bf16.gmra.mxu0 %v396
      %v476 = vpop.f32.mrf.mxu0
      %v477 = vadd.f32 %v434, %v476
      %v478 = vpop.f32.mrf.mxu0
      %v479 = vadd.f32 %v436, %v478
      %480 = vmatmul.bf16.gmra.mxu0 %v399
      %v481 = vpop.f32.mrf.mxu0
      %v482 = vadd.f32 %v439, %v481
      %v483 = vpop.f32.mrf.mxu0
      %v484 = vadd.f32 %v441, %v483
      %485 = vmatmul.bf16.gmra.mxu0 %v402
      %v486 = vpop.f32.mrf.mxu0
      %v487 = vadd.f32 %v444, %v486
      %v488 = vpop.f32.mrf.mxu0
      %489 = vdwg.mxu0
      %490 = vmatpush.bf16.msra.mxu0 %v345
      %491 = vmatpush.bf16.msra.mxu0 %v343
      %492 = vmatpush.bf16.msra.mxu0 %v341
      %493 = vmatpush.bf16.msra.mxu0 %v339
      %494 = vmatpush.bf16.msra.mxu0 %v337
      %495 = vmatpush.bf16.msra.mxu0 %v335
      %496 = vmatpush.bf16.msra.mxu0 %v333
      %497 = vmatpush.bf16.msra.mxu0 %v331
      %498 = vmatmul.bf16.gmra.mxu0 %v231
      %v499 = vpop.f32.mrf.mxu0
      %v500 = vadd.f32 0.0, %v499
      %v501 = vpop.f32.mrf.mxu0
      %v502 = vadd.f32 0.0, %v501
      %503 = vmatmul.bf16.gmra.mxu0 %v233
      %v504 = vpop.f32.mrf.mxu0
      %v505 = vadd.f32 0.0, %v504
      %v506 = vpop.f32.mrf.mxu0
      %v507 = vadd.f32 0.0, %v506
      %508 = vmatmul.bf16.gmra.mxu0 %v235
      %v509 = vpop.f32.mrf.mxu0
      %v510 = vadd.f32 0.0, %v509
      %v511 = vpop.f32.mrf.mxu0
      %v512 = vadd.f32 0.0, %v511
      %513 = vmatmul.bf16.gmra.mxu0 %v237
      %v514 = vpop.f32.mrf.mxu0
      %v515 = vadd.f32 0.0, %v514
      %v516 = vpop.f32.mrf.mxu0
      %v517 = vadd.f32 0.0, %v516
      %518 = vmatmul.bf16.gmra.mxu0 %v239
      %v519 = vpop.f32.mrf.mxu0
      %v520 = vadd.f32 0.0, %v519
      %v521 = vpop.f32.mrf.mxu0
      %v522 = vadd.f32 0.0, %v521
      %523 = vmatmul.bf16.gmra.mxu0 %v241
      %v524 = vpop.f32.mrf.mxu0
      %v525 = vadd.f32 0.0, %v524
      %v526 = vpop.f32.mrf.mxu0
      %v527 = vadd.f32 0.0, %v526
      %528 = vmatmul.bf16.gmra.mxu0 %v243
      %v529 = vpop.f32.mrf.mxu0
      %v530 = vadd.f32 0.0, %v529
      %v531 = vpop.f32.mrf.mxu0
      %532 = vdwg.mxu0
      %533 = vmatpush.bf16.msra.mxu0 0
      %534 = vmatpush.bf16.msra.mxu0 0
      %535 = vmatpush.bf16.msra.mxu0 0
      %536 = vmatpush.bf16.msra.mxu0 %v355
      %537 = vmatpush.bf16.msra.mxu0 %v353
      %538 = vmatpush.bf16.msra.mxu0 %v351
      %539 = vmatpush.bf16.msra.mxu0 %v349
      %540 = vmatpush.bf16.msra.mxu0 %v347
      %541 = vmatmul.bf16.gmra.mxu0 %v384
      %v542 = vpop.f32.mrf.mxu0
      %v543 = vadd.f32 %v500, %v542
      %v544 = vpop.f32.mrf.mxu0
      %v545 = vadd.f32 %v502, %v544
      %546 = vmatmul.bf16.gmra.mxu0 %v387
      %v547 = vpop.f32.mrf.mxu0
      %v548 = vadd.f32 %v505, %v547
      %v549 = vpop.f32.mrf.mxu0
      %v550 = vadd.f32 %v507, %v549
      %551 = vmatmul.bf16.gmra.mxu0 %v390
      %v552 = vpop.f32.mrf.mxu0
      %v553 = vadd.f32 %v510, %v552
      %v554 = vpop.f32.mrf.mxu0
      %v555 = vadd.f32 %v512, %v554
      %556 = vmatmul.bf16.gmra.mxu0 %v393
      %v557 = vpop.f32.mrf.mxu0
      %v558 = vadd.f32 %v515, %v557
      %v559 = vpop.f32.mrf.mxu0
      %v560 = vadd.f32 %v517, %v559
      %561 = vmatmul.bf16.gmra.mxu0 %v396
      %v562 = vpop.f32.mrf.mxu0
      %v563 = vadd.f32 %v520, %v562
      %v564 = vpop.f32.mrf.mxu0
      %v565 = vadd.f32 %v522, %v564
      %566 = vmatmul.bf16.gmra.mxu0 %v399
      %v567 = vpop.f32.mrf.mxu0
      %v568 = vadd.f32 %v525, %v567
      %v569 = vpop.f32.mrf.mxu0
      %v570 = vadd.f32 %v527, %v569
      %571 = vmatmul.bf16.gmra.mxu0 %v402
      %v572 = vpop.f32.mrf.mxu0
      %v573 = vadd.f32 %v530, %v572
      %v574 = vpop.f32.mrf.mxu0
      %575 = vdwg.mxu0
      %576 = vst [vmem:[%s150] sm:$0xff] %v457
      %vm577 = vcmask 556032
      %578 = vst.msk [vmem:[%s150 + $0x8] sm:$0xff] %vm577, %v543
      %579 = vst [vmem:[%s150 + $0x10] sm:$0xff] %v459
      %580 = vst.msk [vmem:[%s150 + $0x18] sm:$0xff] %vm577, %v545
      %581 = vst [vmem:[%s150 + $0x20] sm:$0xff] %v462
      %582 = vst.msk [vmem:[%s150 + $0x28] sm:$0xff] %vm577, %v548
      %583 = vst [vmem:[%s150 + $0x30] sm:$0xff] %v464
      %584 = vst.msk [vmem:[%s150 + $0x38] sm:$0xff] %vm577, %v550
      %585 = vst [vmem:[%s150 + $0x40] sm:$0xff] %v467
      %586 = vst.msk [vmem:[%s150 + $0x48] sm:$0xff] %vm577, %v553
      %587 = vst [vmem:[%s150 + $0x50] sm:$0xff] %v469
      %588 = vst.msk [vmem:[%s150 + $0x58] sm:$0xff] %vm577, %v555
      %589 = vst [vmem:[%s150 + $0x60] sm:$0xff] %v472
      %590 = vst.msk [vmem:[%s150 + $0x68] sm:$0xff] %vm577, %v558
      %591 = vst [vmem:[%s150 + $0x70] sm:$0xff] %v474
      %592 = vst.msk [vmem:[%s150 + $0x78] sm:$0xff] %vm577, %v560
      %593 = vst [vmem:[%s150 + $0x80] sm:$0xff] %v477
      %594 = vst.msk [vmem:[%s150 + $0x88] sm:$0xff] %vm577, %v563
      %595 = vst [vmem:[%s150 + $0x90] sm:$0xff] %v479
      %596 = vst.msk [vmem:[%s150 + $0x98] sm:$0xff] %vm577, %v565
      %597 = vst [vmem:[%s150 + $0xa0] sm:$0xff] %v482
      %598 = vst.msk [vmem:[%s150 + $0xa8] sm:$0xff] %vm577, %v568
      %599 = vst [vmem:[%s150 + $0xb0] sm:$0xff] %v484
      %600 = vst.msk [vmem:[%s150 + $0xb8] sm:$0xff] %vm577, %v570
      %601 = vst [vmem:[%s150 + $0xc0] sm:$0xff] %v487
      %602 = vst.msk [vmem:[%s150 + $0xc8] sm:$0xff] %vm577, %v573
      %s603 = smul.u32 13, %s13
      %p604 = scmp.lt.s32.totalorder %s603, 25
      %s605 = scalar_select %p604, %s603, 25
      %s606 = smul.addr %s605, 2
      %s607 = smul.addr %s606, 8
      %s608 = scalar_lea.vmem %s2, %s607
      // Predicated region
      $region29: #{tpu_custom_call.1} parent=27 // pred_check
        %p609 = pneg %p78
      $region30: #{tpu_custom_call.1} parent=27 // pred_check_branch
        %611 = sbr.rel (%p609) target = $region32
      $region31: #{tpu_custom_call.1} parent=27 // pred_region
        %s612 = smul.u32 13, %s13
      $region32: #{tpu_custom_call.1} parent=27 // pred_fallthru
        _
    $region28: #{tpu_custom_call.1} parent=5 // pred_fallthru
      _
    %p613 = scmp.le.s32.totalorder 2, %s8
    // Predicated region
    $region33: #{tpu_custom_call.1} parent=5 // pred_check
      %p614 = pneg %p613
    $region34: #{tpu_custom_call.1} parent=5 // pred_check_branch
      %616 = sbr.rel (%p614) target = $region36
    $region35: #{tpu_custom_call.1} parent=5 // pred_region
      %s617 = ssub.s32 %s8, 2
      // Predicated region
      $region37: #{tpu_custom_call.1} parent=35 // pred_check
        %p618 = pneg %p84
      $region38: #{tpu_custom_call.1} parent=35 // pred_check_branch
        %620 = sbr.rel (%p618) target = $region40
      $region39: #{tpu_custom_call.1} parent=35 // pred_region
        %s621 = smul.u32 13, %s14
        %p622 = scmp.lt.s32.totalorder %s621, 25
        %s623 = scalar_select %p622, %s621, 25
        %s624 = smul.addr %s623, 2
        %s625 = smul.addr %s624, 8
        %s626 = scalar_lea.vmem %s2, %s625
      $region40: #{tpu_custom_call.1} parent=35 // pred_fallthru
        _
    $region36: #{tpu_custom_call.1} parent=5 // pred_fallthru
      _
  $region6: #{tpu_custom_call.1} parent=0 // loop_footer
    %s12 = sadd.s32 1, %s8
  $region7: #{tpu_custom_call.1} parent=0 // loop_footer_branch
    %7 = sbr.rel target = $region3
  $region8: #{tpu_custom_call.1} parent=0 // loop_exit
    _

</llo_original>
